<compile_context>
chip_gen: v7x
topology: tpu7x:2x2x1
jax: 0.10.0
libtpu: 0.0.40
codegen_flags: <defaults>
</compile_context>

<pallas_src>
import jax
import jax.numpy as jnp
from jax.experimental import pallas as pl
from jax.experimental.pallas import tpu as pltpu

LEAKY_SLOPE = 0.01      # nn.LeakyReLU() default
BN_EPS = 1e-5           # nn.BatchNorm2d default
TM_TARGET = 16384       # target lane-axis tile of H*W per grid step (128-aligned)
STAT_LANES = 128        # lane-padded width of the per-tile stats outputs


def _round_up(a, b):
    return (a + b - 1) // b * b


def _cdiv(a, b):
    return -(-a // b)


# ------------- Pass 1: conv tile (MXU) -> y written once + channel stats -------------
def _conv_y_stats_kernel(w_ref, p_ref, y_ref, sum_ref, sq_ref):
    # w_ref: (outc, K) bf16   p_ref: (K, TM) bf16
    # y_ref: (outc, TM) f32   sum/sq_ref: (outc, STAT_LANES) f32
    y = jnp.dot(w_ref[...], p_ref[...], preferred_element_type=jnp.float32)
    y_ref[...] = y                                   # conv result stored exactly once
    s = jnp.sum(y, axis=1, keepdims=True)            # (outc, 1) cross-lane (XLU) reduce
    sq = jnp.sum(y * y, axis=1, keepdims=True)
    sum_ref[...] = jnp.broadcast_to(s, sum_ref.shape)
    sq_ref[...] = jnp.broadcast_to(sq, sq_ref.shape)


# ------------- Pass 2: pure elementwise BN affine + LeakyReLU (lane-dense) ------------
def _affine_lrelu_kernel(scale_ref, shift_ref, y_ref, o_ref):
    # scale/shift: (outc, 1) f32 broadcast over the TM lane axis. No Pt, no matmul.
    y = y_ref[...] * scale_ref[...] + shift_ref[...]
    o_ref[...] = jnp.where(y >= 0, y, LEAKY_SLOPE * y)


def _im2col_t(xp, k):
    """xp: (N, C, Hp, Wp) replication-padded input -> patches (N, C*k*k, H*W).

    Row order is (c, kh, kw), matching PyTorch's Conv2d weight
    (outc, C, kh, kw).reshape(outc, -1). Columns are row-major over (h, w).
    """
    N, C, Hp, Wp = xp.shape
    H, W = Hp - k + 1, Wp - k + 1
    rows = []
    for c in range(C):
        for i in range(k):
            for j in range(k):
                rows.append(xp[:, c, i:i + H, j:j + W].reshape(N, H * W))
    return jnp.stack(rows, axis=1), H, W


def _bilinear_upsample_align_corners_x2(y):
    # nn.UpsamplingBilinear2d(scale_factor=2) == bilinear, align_corners=True.
    N, C, H, W = y.shape
    Ho, Wo = 2 * H, 2 * W

    def coords(n_in, n_out):
        if n_in == 1:
            z = jnp.zeros((n_out,), jnp.float32)
            zi = jnp.zeros((n_out,), jnp.int32)
            return z, zi, zi
        src = jnp.arange(n_out, dtype=jnp.float32) * (n_in - 1) / (n_out - 1)
        lo = jnp.floor(src).astype(jnp.int32)
        hi = jnp.minimum(lo + 1, n_in - 1)
        return src - lo, lo, hi

    fh, hlo, hhi = coords(H, Ho)
    fw, wlo, whi = coords(W, Wo)
    rows = (y[:, :, hlo, :] * (1.0 - fh)[None, None, :, None]
            + y[:, :, hhi, :] * fh[None, None, :, None])
    out = rows[:, :, :, wlo] * (1.0 - fw) + rows[:, :, :, whi] * fw
    return out


def init_conv_block_params(key, inc, outc, size):
    kw, kb, kg, kbe = jax.random.split(key, 4)
    fan_in = inc * size * size
    w = jax.random.normal(kw, (outc, inc, size, size), jnp.float32) / jnp.sqrt(fan_in)
    b = jax.random.normal(kb, (outc,), jnp.float32) * 0.1
    gamma = 1.0 + 0.1 * jax.random.normal(kg, (outc,), jnp.float32)
    beta = 0.1 * jax.random.normal(kbe, (outc,), jnp.float32)
    return w, b, gamma, beta


def conv_block_forward(x, params, *, size, downsample=False, upsample=False):
    """Pallas implementation of Conv_Block.forward. x: (N, inc, H, W) float32."""
    w, b, gamma, beta = params
    del b  # Conv bias cancels exactly under BatchNorm's mean subtraction.
    N, C, _, _ = x.shape
    outc = w.shape[0]

    # nn.ReplicationPad2d(1); cast to bf16 up-front so the im2col intermediate
    # stream is already half-width.
    xp = jnp.pad(x, ((0, 0), (0, 0), (1, 1), (1, 1)),
                 mode="edge").astype(jnp.bfloat16)

    # Wrapper-side im2col (see TODO at top): (N, K, H*W) bf16, K = C*size*size.
    Pt, H, W = _im2col_t(xp, size)
    K = Pt.shape[1]
    HW = H * W
    M_true = N * HW                                 # true BatchNorm sample count

    W2 = w.reshape(outc, K).astype(jnp.bfloat16)    # (outc, K) bf16

    # Per-image 128-aligned tiling of the H*W lane axis. Zero patch columns give
    # zero conv output (no bias), so padding does not perturb the channel stats.
    HW128 = _round_up(HW, 128)
    n_hw = max(1, _cdiv(HW128, TM_TARGET))
    TM = _round_up(_cdiv(HW128, n_hw), 128)
    if N * n_hw < 2 and HW128 >= 256:               # keep both v7x TCs busy for N == 1
        n_hw = 2
        TM = _round_up(_cdiv(HW128, n_hw), 128)
    HW_pad = TM * n_hw
    if HW_pad != HW:
        Pt = jnp.pad(Pt, ((0, 0), (0, 0), (0, HW_pad - HW)))

    n_tiles = N * n_hw
    M_pad = N * HW_pad

    cparams = pltpu.CompilerParams(
        dimension_semantics=("parallel", "parallel"),   # shards across v7x's 2 TCs
        vmem_limit_bytes=32 * 1024 * 1024)              # explicit; tiles use only ~4 MiB

    matmul_flops = 2 * M_pad * K * outc
    pt_bytes = M_pad * K * 2                            # bf16 patch stream (read once)
    y_bytes = M_pad * outc * 4                          # f32 conv intermediate

    # ------------- Pass 1: conv -> y (stored once) + per-tile channel stats -------------
    y_full, sums, sqs = pl.pallas_call(
        _conv_y_stats_kernel,
        out_shape=(jax.ShapeDtypeStruct((N, outc, HW_pad), jnp.float32),
                   jax.ShapeDtypeStruct((outc, n_tiles * STAT_LANES), jnp.float32),
                   jax.ShapeDtypeStruct((outc, n_tiles * STAT_LANES), jnp.float32)),
        grid=(N, n_hw),
        in_specs=[
            pl.BlockSpec((outc, K), lambda n, j: (0, 0)),         # grid-invariant weight
            pl.BlockSpec((None, K, TM), lambda n, j: (n, 0, j)),  # pipelined patch tiles
        ],
        out_specs=(
            pl.BlockSpec((None, outc, TM), lambda n, j: (n, 0, j)),
            pl.BlockSpec((outc, STAT_LANES), lambda n, j: (0, n * n_hw + j)),
            pl.BlockSpec((outc, STAT_LANES), lambda n, j: (0, n * n_hw + j)),
        ),
        compiler_params=cparams,
        cost_estimate=pl.CostEstimate(
            flops=matmul_flops + 3 * M_pad * outc,
            transcendentals=0,
            bytes_accessed=pt_bytes + outc * K * 2 + y_bytes
            + 2 * n_tiles * STAT_LANES * outc * 4),
    )(W2, Pt)

    # Global (training-mode, biased) BatchNorm statistics over all N*H*W samples,
    # folded into a single per-channel scale / shift.
    # NOTE: variance uses E[y^2] - mean^2 in f32; revisit with centered per-tile
    # partials (Welford merge) if activation magnitudes grow (|mean| >> std).
    ch_sum = jnp.sum(sums.reshape(outc, n_tiles, STAT_LANES)[:, :, 0], axis=1)
    ch_sq = jnp.sum(sqs.reshape(outc, n_tiles, STAT_LANES)[:, :, 0], axis=1)
    mean = ch_sum / M_true
    var = jnp.maximum(ch_sq / M_true - mean * mean, 0.0)
    inv = jax.lax.rsqrt(var + BN_EPS)
    scale = (gamma * inv).astype(jnp.float32).reshape(outc, 1)
    shift = (beta - mean * gamma * inv).astype(jnp.float32).reshape(outc, 1)
    # TODO(synk): BatchNorm running_mean/running_var buffers are not updated
    # (forward output matches nn.BatchNorm2d in training mode).

    # --------- Pass 2: elementwise BN affine + LeakyReLU, stores in NCHW layout ---------
    out_full = pl.pallas_call(
        _affine_lrelu_kernel,
        out_shape=jax.ShapeDtypeStruct((N, outc, HW_pad), jnp.float32),
        grid=(N, n_hw),
        in_specs=[
            pl.BlockSpec((outc, 1), lambda n, j: (0, 0)),
            pl.BlockSpec((outc, 1), lambda n, j: (0, 0)),
            pl.BlockSpec((None, outc, TM), lambda n, j: (n, 0, j)),
        ],
        out_specs=pl.BlockSpec((None, outc, TM), lambda n, j: (n, 0, j)),
        compiler_params=cparams,
        cost_estimate=pl.CostEstimate(
            flops=3 * M_pad * outc,
            transcendentals=0,
            bytes_accessed=2 * y_bytes + 2 * outc * 4),
    )(scale, shift, y_full)

    # (N, outc, HW_pad) -> (N, outc, H, W): the slice is a no-op when HW % 128 == 0
    # and the reshape is free -- no XLA transpose (layout folded into out_specs).
    y = out_full[:, :, :HW].reshape(N, outc, H, W)

    if downsample:
        # nn.MaxPool2d(kernel_size=2, stride=2)  (plain-JAX glue)
        y = jax.lax.reduce_window(y, -jnp.inf, jax.lax.max,
                                  (1, 1, 2, 2), (1, 1, 2, 2), "VALID")
    if upsample:
        # nn.UpsamplingBilinear2d(scale_factor=2)  (plain-JAX glue)
        y = _bilinear_upsample_align_corners_x2(y)
    return y


def _reference_forward(x, params, *, size, downsample=False, upsample=False):
    """Plain-JAX reference (same bf16 matmul precision) for validation."""
    w, b, gamma, beta = params
    N, C, _, _ = x.shape
    outc = w.shape[0]
    xp = jnp.pad(x, ((0, 0), (0, 0), (1, 1), (1, 1)),
                 mode="edge").astype(jnp.bfloat16)
    Pt, H, W = _im2col_t(xp, size)                       # (N, K, H*W)
    K = Pt.shape[1]
    Pm = Pt.transpose(1, 0, 2).reshape(K, N * H * W)
    y = jnp.dot(w.reshape(outc, K).astype(jnp.bfloat16), Pm,
                preferred_element_type=jnp.float32) + b.reshape(outc, 1)
    mean = jnp.mean(y, axis=1, keepdims=True)
    var = jnp.mean(jnp.square(y - mean), axis=1, keepdims=True)
    yn = (y - mean) * jax.lax.rsqrt(var + BN_EPS) * gamma.reshape(outc, 1) \
        + beta.reshape(outc, 1)
    yn = jnp.where(yn >= 0, yn, LEAKY_SLOPE * yn)
    out = yn.reshape(outc, N, H, W).transpose(1, 0, 2, 3)
    if downsample:
        out = jax.lax.reduce_window(out, -jnp.inf, jax.lax.max,
                                    (1, 1, 2, 2), (1, 1, 2, 2), "VALID")
    if upsample:
        out = _bilinear_upsample_align_corners_x2(out)
    return out


if __name__ == "__main__":
    key = jax.random.PRNGKey(0)
    kx, kp = jax.random.split(key)

    N, inc, outc, size, H, W = 2, 4, 8, 3, 16, 16
    x = jax.random.normal(kx, (N, inc, H, W), jnp.float32)
    params = init_conv_block_params(kp, inc, outc, size)

    fwd = jax.jit(conv_block_forward,
                  static_argnames=("size", "downsample", "upsample"))

    # Base block: (2, 8, 16, 16)
    y = jax.block_until_ready(fwd(x, params, size=size))
    assert y.shape == (N, outc, H, W), y.shape
    y_ref = _reference_forward(x, params, size=size)
    err = float(jnp.max(jnp.abs(y - y_ref)))
    assert err < 5e-3, f"mismatch vs reference (base): max abs err {err}"

    # downsample variant
    yd = jax.block_until_ready(fwd(x, params, size=size, downsample=True))
    assert yd.shape == (N, outc, H // 2, W // 2), yd.shape
    errd = float(jnp.max(jnp.abs(yd - _reference_forward(
        x, params, size=size, downsample=True))))
    assert errd < 5e-3, f"mismatch vs reference (downsample): max abs err {errd}"

    # upsample variant
    yu = jax.block_until_ready(fwd(x, params, size=size, upsample=True))
    assert yu.shape == (N, outc, 2 * H, 2 * W), yu.shape
    erru = float(jnp.max(jnp.abs(yu - _reference_forward(
        x, params, size=size, upsample=True))))
    assert erru < 5e-3, f"mismatch vs reference (upsample): max abs err {erru}"

    print("KERNEL_OK")
</pallas_src>

<mosaic_0001>
module attributes {stable_mosaic.version = 11 : i64} {
  func.func @_conv_y_stats_kernel(%arg0: i32, %arg1: i32, %arg2: memref<8x36xbf16, #tpu.memory_space<vmem>>, %arg3: memref<1x36x256xbf16, #tpu.memory_space<vmem>>, %arg4: memref<1x8x256xf32, #tpu.memory_space<vmem>>, %arg5: memref<8x128xf32, #tpu.memory_space<vmem>>, %arg6: memref<8x128xf32, #tpu.memory_space<vmem>>) attributes {dimension_semantics = [#tpu.dimension_semantics<parallel>, #tpu.dimension_semantics<parallel>], iteration_bounds = array<i64: 2, 1>, scalar_prefetch = 0 : i64, scratch_operands = 0 : i64, tpu.core_type = #tpu.core_type<tc>, window_params = [{pipeline_mode = #tpu.pipeline_mode<synchronous>, transform_indices = @transform_0, window_bounds = array<i64: 8, 36>}, {transform_indices = @transform_1, window_bounds = array<i64: 1, 36, 256>}, {transform_indices = @transform_2, window_bounds = array<i64: 1, 8, 256>}, {transform_indices = @transform_3, window_bounds = array<i64: 8, 128>}, {transform_indices = @transform_4, window_bounds = array<i64: 8, 128>}]} {
    %c0 = arith.constant 0 : index
    %c0_0 = arith.constant 0 : index
    %0 = vector.load %arg2[%c0, %c0_0] : memref<8x36xbf16, #tpu.memory_space<vmem>>, vector<8x36xbf16>
    %c0_1 = arith.constant 0 : index
    %c0_2 = arith.constant 0 : index
    %c0_3 = arith.constant 0 : index
    %1 = vector.load %arg3[%c0_1, %c0_2, %c0_3] : memref<1x36x256xbf16, #tpu.memory_space<vmem>>, vector<1x36x256xbf16>
    %2 = vector.shape_cast %1 : vector<1x36x256xbf16> to vector<36x256xbf16>
    %cst = arith.constant dense<0.000000e+00> : vector<8x256xf32>
    %3 = tpu.matmul %0, %2, %cst {dimension_numbers = #tpu.dot_dimension_numbers<[1], [0], [0], [1], [0, 0, 1, 1], [], []>} : vector<8x36xbf16>, vector<36x256xbf16>, vector<8x256xf32> -> vector<8x256xf32>
    %c0_4 = arith.constant 0 : index
    %c0_5 = arith.constant 0 : index
    %c0_6 = arith.constant 0 : index
    %4 = vector.load %arg4[%c0_4, %c0_5, %c0_6] : memref<1x8x256xf32, #tpu.memory_space<vmem>>, vector<1x8x256xf32>
    %5 = vector.shape_cast %4 : vector<1x8x256xf32> to vector<8x256xf32>
    %6 = vector.shape_cast %3 : vector<8x256xf32> to vector<1x8x256xf32>
    tpu.vector_store %arg4[%c0_4, %c0_5, %c0_6], %6 {strides = array<i32>} : memref<1x8x256xf32, #tpu.memory_space<vmem>>, vector<1x8x256xf32>,
    %cst_7 = arith.constant dense<0.000000e+00> : vector<8xf32>
    %7 = vector.multi_reduction <add>, %3, %cst_7 [1] : vector<8x256xf32> to vector<8xf32>
    %8 = vector.shape_cast %7 : vector<8xf32> to vector<8x1xf32>
    %9 = arith.mulf %3, %3 : vector<8x256xf32>
    %cst_8 = arith.constant dense<0.000000e+00> : vector<8xf32>
    %10 = vector.multi_reduction <add>, %9, %cst_8 [1] : vector<8x256xf32> to vector<8xf32>
    %11 = vector.shape_cast %10 : vector<8xf32> to vector<8x1xf32>
    %12 = vector.shape_cast %8 : vector<8x1xf32> to vector<8x1xf32>
    %13 = vector.broadcast %12 : vector<8x1xf32> to vector<8x128xf32>
    %c0_9 = arith.constant 0 : index
    %c0_10 = arith.constant 0 : index
    %14 = vector.load %arg5[%c0_9, %c0_10] : memref<8x128xf32, #tpu.memory_space<vmem>>, vector<8x128xf32>
    tpu.vector_store %arg5[%c0_9, %c0_10], %13 {strides = array<i32>} : memref<8x128xf32, #tpu.memory_space<vmem>>, vector<8x128xf32>,
    %15 = vector.shape_cast %11 : vector<8x1xf32> to vector<8x1xf32>
    %16 = vector.broadcast %15 : vector<8x1xf32> to vector<8x128xf32>
    %c0_11 = arith.constant 0 : index
    %c0_12 = arith.constant 0 : index
    %17 = vector.load %arg6[%c0_11, %c0_12] : memref<8x128xf32, #tpu.memory_space<vmem>>, vector<8x128xf32>
    tpu.vector_store %arg6[%c0_11, %c0_12], %16 {strides = array<i32>} : memref<8x128xf32, #tpu.memory_space<vmem>>, vector<8x128xf32>,
    return
  }
  func.func @transform_0(%arg0: i32, %arg1: i32) -> (i32, i32) {
    %c0_i32 = arith.constant 0 : i32
    %c0_i32_0 = arith.constant 0 : i32
    %c0_i32_1 = arith.constant 0 : i32
    return %c0_i32, %c0_i32_0 : i32, i32
  }
  func.func @transform_1(%arg0: i32, %arg1: i32) -> (i32, i32, i32) {
    %c0_i32 = arith.constant 0 : i32
    %c0_i32_0 = arith.constant 0 : i32
    return %arg0, %c0_i32, %arg1 : i32, i32, i32
  }
  func.func @transform_2(%arg0: i32, %arg1: i32) -> (i32, i32, i32) {
    %c0_i32 = arith.constant 0 : i32
    %c0_i32_0 = arith.constant 0 : i32
    return %arg0, %c0_i32, %arg1 : i32, i32, i32
  }
  func.func @transform_3(%arg0: i32, %arg1: i32) -> (i32, i32) {
    %c1_i32 = arith.constant 1 : i32
    %0 = arith.muli %arg0, %c1_i32 : i32
    %1 = arith.addi %0, %arg1 : i32
    %c0_i32 = arith.constant 0 : i32
    %c0_i32_0 = arith.constant 0 : i32
    return %c0_i32, %1 : i32, i32
  }
  func.func @transform_4(%arg0: i32, %arg1: i32) -> (i32, i32) {
    %c1_i32 = arith.constant 1 : i32
    %0 = arith.muli %arg0, %c1_i32 : i32
    %1 = arith.addi %0, %arg1 : i32
    %c0_i32 = arith.constant 0 : i32
    %c0_i32_0 = arith.constant 0 : i32
    return %c0_i32, %1 : i32, i32
  }
}

module attributes {stable_mosaic.version = 11 : i64} {
  func.func @_affine_lrelu_kernel(%arg0: i32, %arg1: i32, %arg2: memref<8x1xf32, #tpu.memory_space<vmem>>, %arg3: memref<8x1xf32, #tpu.memory_space<vmem>>, %arg4: memref<1x8x256xf32, #tpu.memory_space<vmem>>, %arg5: memref<1x8x256xf32, #tpu.memory_space<vmem>>) attributes {dimension_semantics = [#tpu.dimension_semantics<parallel>, #tpu.dimension_semantics<parallel>], iteration_bounds = array<i64: 2, 1>, scalar_prefetch = 0 : i64, scratch_operands = 0 : i64, tpu.core_type = #tpu.core_type<tc>, window_params = [{pipeline_mode = #tpu.pipeline_mode<synchronous>, transform_indices = @transform_0, window_bounds = array<i64: 8, 1>}, {pipeline_mode = #tpu.pipeline_mode<synchronous>, transform_indices = @transform_1, window_bounds = array<i64: 8, 1>}, {transform_indices = @transform_2, window_bounds = array<i64: 1, 8, 256>}, {transform_indices = @transform_3, window_bounds = array<i64: 1, 8, 256>}]} {
    %c0 = arith.constant 0 : index
    %c0_0 = arith.constant 0 : index
    %c0_1 = arith.constant 0 : index
    %0 = vector.load %arg4[%c0, %c0_0, %c0_1] : memref<1x8x256xf32, #tpu.memory_space<vmem>>, vector<1x8x256xf32>
    %1 = vector.shape_cast %0 : vector<1x8x256xf32> to vector<8x256xf32>
    %c0_2 = arith.constant 0 : index
    %c0_3 = arith.constant 0 : index
    %2 = vector.load %arg2[%c0_2, %c0_3] : memref<8x1xf32, #tpu.memory_space<vmem>>, vector<8x1xf32>
    %3 = vector.broadcast %2 : vector<8x1xf32> to vector<8x256xf32>
    %4 = arith.mulf %1, %3 : vector<8x256xf32>
    %c0_4 = arith.constant 0 : index
    %c0_5 = arith.constant 0 : index
    %5 = vector.load %arg3[%c0_4, %c0_5] : memref<8x1xf32, #tpu.memory_space<vmem>>, vector<8x1xf32>
    %6 = vector.broadcast %5 : vector<8x1xf32> to vector<8x256xf32>
    %7 = arith.addf %4, %6 : vector<8x256xf32>
    %cst = arith.constant 0.000000e+00 : f32
    %8 = vector.broadcast %cst : f32 to vector<8x256xf32>
    %9 = arith.cmpf oge, %7, %8 : vector<8x256xf32>
    %cst_6 = arith.constant 0.00999999977 : f32
    %10 = vector.broadcast %cst_6 : f32 to vector<8x256xf32>
    %11 = arith.mulf %10, %7 : vector<8x256xf32>
    %12 = arith.select %9, %7, %11 : vector<8x256xi1>, vector<8x256xf32>
    %c0_7 = arith.constant 0 : index
    %c0_8 = arith.constant 0 : index
    %c0_9 = arith.constant 0 : index
    %13 = vector.load %arg5[%c0_7, %c0_8, %c0_9] : memref<1x8x256xf32, #tpu.memory_space<vmem>>, vector<1x8x256xf32>
    %14 = vector.shape_cast %13 : vector<1x8x256xf32> to vector<8x256xf32>
    %15 = vector.shape_cast %12 : vector<8x256xf32> to vector<1x8x256xf32>
    tpu.vector_store %arg5[%c0_7, %c0_8, %c0_9], %15 {strides = array<i32>} : memref<1x8x256xf32, #tpu.memory_space<vmem>>, vector<1x8x256xf32>,
    return
  }
  func.func @transform_0(%arg0: i32, %arg1: i32) -> (i32, i32) {
    %c0_i32 = arith.constant 0 : i32
    %c0_i32_0 = arith.constant 0 : i32
    %c0_i32_1 = arith.constant 0 : i32
    return %c0_i32, %c0_i32_0 : i32, i32
  }
  func.func @transform_1(%arg0: i32, %arg1: i32) -> (i32, i32) {
    %c0_i32 = arith.constant 0 : i32
    %c0_i32_0 = arith.constant 0 : i32
    %c0_i32_1 = arith.constant 0 : i32
    return %c0_i32, %c0_i32_0 : i32, i32
  }
  func.func @transform_2(%arg0: i32, %arg1: i32) -> (i32, i32, i32) {
    %c0_i32 = arith.constant 0 : i32
    %c0_i32_0 = arith.constant 0 : i32
    return %arg0, %c0_i32, %arg1 : i32, i32, i32
  }
  func.func @transform_3(%arg0: i32, %arg1: i32) -> (i32, i32, i32) {
    %c0_i32 = arith.constant 0 : i32
    %c0_i32_0 = arith.constant 0 : i32
    return %arg0, %c0_i32, %arg1 : i32, i32, i32
  }
}

</mosaic_0001>

<llo_original>
// kernel: squeeze.27
$region0: #{squeeze.27}
  %s0 = inlined_call_operand.vmem [shape: bf16[2,1,16,16], index: 0, kind: input, shape index: {}]
  %s1 = inlined_call_operand.vmem [shape: bf16[2,1,256], index: 1, kind: output, shape index: {}]
  $region1: #{squeeze.27} parent=0
    #allocation0 [shape = 'u8[16384]{0}', space=vmem, size = 0x4000, scoped, tag = 'scoped mem for output reshape']
    #allocation1 [shape = 'u8[16384]{0}', space=vmem, size = 0x4000, scoped, tag = 'scoped mem for input reshape']
    %s3 = smul.u32 4, 2
    %s4 = sshllo.u32 0, %s3
    %s5 = smul.addr 4, 3
    %s6 = scalar_lea.vmem %s0, %s5
    %s7 = sshrl.u32 %s4, 1
    %s8 = sor.u32 %s4, %s7
    %s9 = sand.u32 %s8, 85
    %s10 = sshrl.u32 %s9, 1
    %s11 = sor.u32 %s9, %s10
    %s12 = sand.u32 51, %s11
    %s13 = sshrl.u32 %s12, 2
    %s14 = sor.u32 %s12, %s13
    %s15 = sand.u32 15, %s14
    %v16 = vld [vmem:[%s6] sm:%s15]
    %v17 = vunpack.c.l.bf16 %v16
    %v18 = vunpack.c.h.bf16 %v16
    %s19 = scalar_lea.vmem [#allocation1], 24
    %20 = vst [vmem:[%s19] sm:%s4] %v17
    %s21 = smul.addr 4, 2
    %s22 = scalar_lea.vmem %s0, %s21
    %s23 = sshrl.u32 %s4, 1
    %s24 = sor.u32 %s4, %s23
    %s25 = sand.u32 %s24, 85
    %s26 = sshrl.u32 %s25, 1
    %s27 = sor.u32 %s25, %s26
    %s28 = sand.u32 51, %s27
    %s29 = sshrl.u32 %s28, 2
    %s30 = sor.u32 %s28, %s29
    %s31 = sand.u32 15, %s30
    %v32 = vld [vmem:[%s22] sm:%s31]
    %v33 = vunpack.c.l.bf16 %v32
    %v34 = vunpack.c.h.bf16 %v32
    %s35 = scalar_lea.vmem [#allocation1], 16
    %36 = vst [vmem:[%s35] sm:%s4] %v33
    %s37 = scalar_lea.vmem %s0, 4
    %s38 = sshrl.u32 %s4, 1
    %s39 = sor.u32 %s4, %s38
    %s40 = sand.u32 %s39, 85
    %s41 = sshrl.u32 %s40, 1
    %s42 = sor.u32 %s40, %s41
    %s43 = sand.u32 51, %s42
    %s44 = sshrl.u32 %s43, 2
    %s45 = sor.u32 %s43, %s44
    %s46 = sand.u32 15, %s45
    %v47 = vld [vmem:[%s37] sm:%s46]
    %v48 = vunpack.c.l.bf16 %v47
    %v49 = vunpack.c.h.bf16 %v47
    %s50 = scalar_lea.vmem [#allocation1], 8
    %51 = vst [vmem:[%s50] sm:%s4] %v48
    %s52 = sshrl.u32 %s4, 1
    %s53 = sor.u32 %s4, %s52
    %s54 = sand.u32 %s53, 85
    %s55 = sshrl.u32 %s54, 1
    %s56 = sor.u32 %s54, %s55
    %s57 = sand.u32 51, %s56
    %s58 = sshrl.u32 %s57, 2
    %s59 = sor.u32 %s57, %s58
    %s60 = sand.u32 15, %s59
    %v61 = vld [vmem:[%s0] sm:%s60]
    %v62 = vunpack.c.l.bf16 %v61
    %v63 = vunpack.c.h.bf16 %v61
    %64 = vst [vmem:[#allocation1] sm:%s4] %v62
    %v65 = vld [vmem:[#allocation1] ss:$8 sm:$0xf]
    %vm66 = vcmask 130048
    %67 = vst.msk [vmem:[#allocation0] ss:$8 sm:$0xf] %vm66, %v65
    %s68 = scalar_lea.vmem [#allocation1], 7
    %v69 = vld [vmem:[%s68] ss:$8 sm:$0xf]
    %70 = vrot.lane.b32.xlu0 %v69, 112
    %v71 = vpop.permute.xlu0 %70
    %vm72 = vcmask 1048448
    %73 = vst.msk [vmem:[#allocation0] ss:$8 sm:$0xf] %vm72, %v71
    %s74 = scalar_lea.vmem [#allocation1], 6
    %v75 = vld [vmem:[%s74] ss:$8 sm:$0xf]
    %76 = vrot.lane.b32.xlu0 %v75, 96
    %v77 = vpop.permute.xlu0 %76
    %vm78 = vcmask 917248
    %79 = vst.msk [vmem:[#allocation0] ss:$8 sm:$0xf] %vm78, %v77
    %s80 = scalar_lea.vmem [#allocation1], 5
    %v81 = vld [vmem:[%s80] ss:$8 sm:$0xf]
    %82 = vrot.lane.b32.xlu0 %v81, 80
    %v83 = vpop.permute.xlu0 %82
    %vm84 = vcmask 786048
    %85 = vst.msk [vmem:[#allocation0] ss:$8 sm:$0xf] %vm84, %v83
    %s86 = scalar_lea.vmem [#allocation1], 4
    %v87 = vld [vmem:[%s86] ss:$8 sm:$0xf]
    %88 = vrot.lane.b32.xlu0 %v87, 64
    %v89 = vpop.permute.xlu0 %88
    %vm90 = vcmask 654848
    %91 = vst.msk [vmem:[#allocation0] ss:$8 sm:$0xf] %vm90, %v89
    %s92 = scalar_lea.vmem [#allocation1], 3
    %v93 = vld [vmem:[%s92] ss:$8 sm:$0xf]
    %94 = vrot.lane.b32.xlu0 %v93, 48
    %v95 = vpop.permute.xlu0 %94
    %vm96 = vcmask 523648
    %97 = vst.msk [vmem:[#allocation0] ss:$8 sm:$0xf] %vm96, %v95
    %s98 = scalar_lea.vmem [#allocation1], 2
    %v99 = vld [vmem:[%s98] ss:$8 sm:$0xf]
    %100 = vrot.lane.b32.xlu0 %v99, 32
    %v101 = vpop.permute.xlu0 %100
    %vm102 = vcmask 392448
    %103 = vst.msk [vmem:[#allocation0] ss:$8 sm:$0xf] %vm102, %v101
    %s104 = scalar_lea.vmem [#allocation1], 1
    %v105 = vld [vmem:[%s104] ss:$8 sm:$0xf]
    %106 = vrot.lane.b32.xlu0 %v105, 16
    %v107 = vpop.permute.xlu0 %106
    %vm108 = vcmask 261248
    %109 = vst.msk [vmem:[#allocation0] ss:$8 sm:$0xf] %vm108, %v107
    %s111 = smul.u32 1, 2
    %s112 = sshllo.u32 0, %s111
    %s113 = sshrl.u32 %s111, 1
    %v114 = vld [vmem:[#allocation0] sm:%s112]
    %v115 = vpack.c.bf16 0.0, %v114
    %s116 = sshllo.u32 0, %s113
    %117 = vst [vmem:[%s1] sm:%s116] %v115
    %s118 = scalar_lea.vmem [#allocation0], 8
    %v119 = vld [vmem:[%s118] sm:%s112]
    %v120 = vpack.c.bf16 0.0, %v119
    %s121 = sshllo.u32 0, %s113
    %s122 = scalar_lea.vmem %s1, 1
    %123 = vst [vmem:[%s122] sm:%s121] %v120
    %s124 = scalar_lea.vmem [#allocation0], 16
    %v125 = vld [vmem:[%s124] sm:%s112]
    %v126 = vpack.c.bf16 0.0, %v125
    %s127 = sshllo.u32 0, %s113
    %s128 = smul.addr 1, 2
    %s129 = scalar_lea.vmem %s1, %s128
    %130 = vst [vmem:[%s129] sm:%s127] %v126
    %s131 = scalar_lea.vmem [#allocation0], 24
    %v132 = vld [vmem:[%s131] sm:%s112]
    %v133 = vpack.c.bf16 0.0, %v132
    %s134 = sshllo.u32 0, %s113
    %s135 = smul.addr 1, 3
    %s136 = scalar_lea.vmem %s1, %s135
    %137 = vst [vmem:[%s136] sm:%s134] %v133

// kernel: conv_block_forward.3
$region0: #{conv_block_forward.3}
  #allocation0 [shape = 'u32[]', space=smem, size = 0x4, offset = 0x4, fixed_abs, tag = 'smem constant byte address 0x4 - core index']
  #allocation1 [shape = 'u32[144,128]{1,0:T(1,128)}', space=vmem, size = 0x12000, scoped, tag = 'internal scratch']
  %s0 = inlined_call_operand.vmem [shape: f32[8,1], index: 0, kind: input, shape index: {}]
  %s1 = inlined_call_operand.vmem [shape: f32[8,1], index: 1, kind: input, shape index: {}]
  %s2 = inlined_call_operand.vmem [shape: f32[2,8,256], index: 2, kind: input, shape index: {}]
  %s3 = inlined_call_operand.vmem [shape: f32[2,8,256], index: 3, kind: output, shape index: {}]
  %s4 = sld [smem:[#allocation0]]
  $region45: #{conv_block_forward.3} parent=0
    _
  %s6 = ssub.s32 1, %s4
  %s7 = scalar_select 0, %s6, %s4
  loop: start=0, step=1, limit=4
  $region2: #{conv_block_forward.3} parent=0 // loop_pre_header
    _
  $region3: #{conv_block_forward.3} parent=0 // loop_header
    %s9 = sphi 0, %s13
    %p10 = scmp.ge.s32.totalorder %s9, 4
    %s16 = sphi 0, %s28
    %s17 = sphi 0, %s24
    %s18 = sphi 0, %s16
    %s19 = sphi 0, %s17
    %s20 = sphi 0, %s18
    %s21 = sphi 0, %s19
    %s29 = sphi 0, %s29
    %s31 = sphi 0, %s29
    %s32 = sphi 0, %s31
    %s46 = sphi 0, %s32
    %s50 = sphi 0, %s50
    %s52 = sphi 0, %s50
    %s53 = sphi 0, %s52
    %s67 = sphi 0, %s53
    %s75 = sphi 0, %s77
    %s78 = sphi 0, %s75
    %s79 = sphi 0, %s78
    %s95 = sphi 0, %s79
    %s103 = sphi 0, %s105
    %s106 = sphi 0, %s103
    %s107 = sphi 0, %s106
    %s123 = sphi 0, %s107
  $region4: #{conv_block_forward.3} parent=0 // loop_header_branch
    %12 = sbr.rel (%p10) target = $region8
  $region5: #{conv_block_forward.3} parent=0 // loop_body
    %s14 = ssub.s32 %s9, 1
    %s15 = ssub.s32 %s9, 2
    %s22 = sadd.s32 1, %s17
    %p23 = scmp.ge.s32.totalorder %s22, 1
    %s24 = scalar_select %p23, 0, %s22
    %s25 = sadd.s32 1, %s16
    %s26 = scalar_select %p23, %s25, %s16
    %p27 = scmp.ge.s32.totalorder %s26, 2
    %s28 = scalar_select %p27, 0, %s26
    %s30 = sadd.s32 %s29, 1
    %p33 = scmp.eq.s32.totalorder %s9, 1
    %p34 = scmp.ne.s32.totalorder %s29, %s31
    %p35 = scmp.eq.s32.totalorder %s9, 0
    %p36 = por %p34, %p35
    %p37 = scmp.ne.s32.totalorder %s29, %s31
    %p38 = scmp.eq.s32.totalorder %s14, 1
    %p39 = por %p37, %p38
    %p40 = scmp.ne.s32.totalorder %s31, %s32
    %p41 = scmp.eq.s32.totalorder %s14, 0
    %p42 = por %p40, %p41
    %p43 = scmp.ne.s32.totalorder %s31, %s32
    %p44 = scmp.eq.s32.totalorder %s15, 1
    %p45 = por %p43, %p44
    %p47 = scmp.ne.s32.totalorder %s32, %s46
    %p48 = scmp.eq.s32.totalorder %s15, 0
    %p49 = por %p47, %p48
    %s51 = sadd.s32 %s50, 1
    %p54 = scmp.eq.s32.totalorder %s9, 1
    %p55 = scmp.ne.s32.totalorder %s50, %s52
    %p56 = scmp.eq.s32.totalorder %s9, 0
    %p57 = por %p55, %p56
    %p58 = scmp.ne.s32.totalorder %s50, %s52
    %p59 = scmp.eq.s32.totalorder %s14, 1
    %p60 = por %p58, %p59
    %p61 = scmp.ne.s32.totalorder %s52, %s53
    %p62 = scmp.eq.s32.totalorder %s14, 0
    %p63 = por %p61, %p62
    %p64 = scmp.ne.s32.totalorder %s52, %s53
    %p65 = scmp.eq.s32.totalorder %s15, 1
    %p66 = por %p64, %p65
    %p68 = scmp.ne.s32.totalorder %s53, %s67
    %p69 = scmp.eq.s32.totalorder %s15, 0
    %p70 = por %p68, %p69
    %s71 = ssub.s32 %s16, %s28
    %s72 = ssub.s32 %s17, %s24
    %s73 = sor.u32 %s71, %s72
    %p74 = scmp.eq.s32.totalorder %s73, 0
    %s76 = sadd.s32 %s75, 1
    %s77 = scalar_select %p74, %s75, %s76
    %p80 = pneg %p74
    %p81 = scmp.eq.s32.totalorder %s9, 1
    %p82 = por %p80, %p81
    %p83 = scmp.ne.s32.totalorder %s75, %s78
    %p84 = scmp.eq.s32.totalorder %s9, 0
    %p85 = por %p83, %p84
    %p86 = scmp.ne.s32.totalorder %s75, %s78
    %p87 = scmp.eq.s32.totalorder %s14, 1
    %p88 = por %p86, %p87
    %p89 = scmp.ne.s32.totalorder %s78, %s79
    %p90 = scmp.eq.s32.totalorder %s14, 0
    %p91 = por %p89, %p90
    %p92 = scmp.ne.s32.totalorder %s78, %s79
    %p93 = scmp.eq.s32.totalorder %s15, 1
    %p94 = por %p92, %p93
    %p96 = scmp.ne.s32.totalorder %s79, %s95
    %p97 = scmp.eq.s32.totalorder %s15, 0
    %p98 = por %p96, %p97
    %s99 = ssub.s32 %s16, %s28
    %s100 = ssub.s32 %s17, %s24
    %s101 = sor.u32 %s99, %s100
    %p102 = scmp.eq.s32.totalorder %s101, 0
    %s104 = sadd.s32 %s103, 1
    %s105 = scalar_select %p102, %s103, %s104
    %p108 = pneg %p102
    %p109 = scmp.eq.s32.totalorder %s9, 1
    %p110 = por %p108, %p109
    %p111 = scmp.ne.s32.totalorder %s103, %s106
    %p112 = scmp.eq.s32.totalorder %s9, 0
    %p113 = por %p111, %p112
    %p114 = scmp.ne.s32.totalorder %s103, %s106
    %p115 = scmp.eq.s32.totalorder %s14, 1
    %p116 = por %p114, %p115
    %p117 = scmp.ne.s32.totalorder %s106, %s107
    %p118 = scmp.eq.s32.totalorder %s14, 0
    %p119 = por %p117, %p118
    %p120 = scmp.ne.s32.totalorder %s106, %s107
    %p121 = scmp.eq.s32.totalorder %s15, 1
    %p122 = por %p120, %p121
    %p124 = scmp.ne.s32.totalorder %s107, %s123
    %p125 = scmp.eq.s32.totalorder %s15, 0
    %p126 = por %p124, %p125
    %p127 = scmp.le.s32.totalorder 1, %s9
    %p128 = scmp.lt.s32.totalorder %s9, 3
    %p129 = pnand %p127, %p128
    %p130 = pneg %p129
    // Predicated region
    $region9: #{conv_block_forward.3} parent=5 // pred_check
      _
    $region10: #{conv_block_forward.3} parent=5 // pred_check_branch
      %132 = sbr.rel (%p129) target = $region12
    $region11: #{conv_block_forward.3} parent=5 // pred_region
      %s133 = ssub.s32 %s9, 1
      // Predicated region
      $region13: #{conv_block_forward.3} parent=11 // pred_check
        %p134 = pneg %p42
      $region14: #{conv_block_forward.3} parent=11 // pred_check_branch
        %136 = sbr.rel (%p134) target = $region16
      $region15: #{conv_block_forward.3} parent=11 // pred_region
        _
      $region16: #{conv_block_forward.3} parent=11 // pred_fallthru
        _
      // Predicated region
      $region17: #{conv_block_forward.3} parent=11 // pred_check
        %p137 = pneg %p63
      $region18: #{conv_block_forward.3} parent=11 // pred_check_branch
        %139 = sbr.rel (%p137) target = $region20
      $region19: #{conv_block_forward.3} parent=11 // pred_region
        _
      $region20: #{conv_block_forward.3} parent=11 // pred_fallthru
        _
    $region12: #{conv_block_forward.3} parent=5 // pred_fallthru
      _
    %p140 = scmp.lt.s32.totalorder %s9, 2
    // Predicated region
    $region21: #{conv_block_forward.3} parent=5 // pred_check
      %p141 = pneg %p140
    $region22: #{conv_block_forward.3} parent=5 // pred_check_branch
      %143 = sbr.rel (%p141) target = $region24
    $region23: #{conv_block_forward.3} parent=5 // pred_region
      // Predicated region
      $region25: #{conv_block_forward.3} parent=23 // pred_check
        %p144 = pneg %p85
      $region26: #{conv_block_forward.3} parent=23 // pred_check_branch
        %146 = sbr.rel (%p144) target = $region28
      $region27: #{conv_block_forward.3} parent=23 // pred_region
        %s147 = smul.u32 2, %s17
        %p148 = scmp.lt.s32.totalorder %s16, 1
        %s149 = scalar_select %p148, %s16, 1
        %p150 = scmp.lt.s32.totalorder %s147, 1
        %s151 = scalar_select %p150, %s147, 1
        %s152 = smul.addr %s149, 2
        %s153 = sadd.s32 %s151, %s152
        %s154 = smul.addr %s153, 8
        %s155 = scalar_lea.vmem %s2, %s154
        %s156 = smul.u32 2, %s17
      $region28: #{conv_block_forward.3} parent=23 // pred_fallthru
        _
    $region24: #{conv_block_forward.3} parent=5 // pred_fallthru
      _
    %p157 = scmp.le.s32.totalorder 1, %s9
    %p158 = scmp.lt.s32.totalorder %s9, 3
    %p159 = pnand %p157, %p158
    %p160 = pneg %p159
    // Predicated region
    $region29: #{conv_block_forward.3} parent=5 // pred_check
      _
    $region30: #{conv_block_forward.3} parent=5 // pred_check_branch
      %162 = sbr.rel (%p159) target = $region32
    $region31: #{conv_block_forward.3} parent=5 // pred_region
      %s163 = ssub.s32 %s9, 1
      %p164 = pneg %p42
      %p165 = pneg %p39
      %p166 = pneg %p63
      %p167 = pneg %p60
      %s168 = smul.u32 2, %s19
      %p169 = scmp.lt.s32.totalorder %s18, 1
      %s170 = scalar_select %p169, %s18, 1
      %p171 = scmp.lt.s32.totalorder %s168, 1
      %s172 = scalar_select %p171, %s168, 1
      %s173 = smul.addr %s170, 2
      %s174 = sadd.s32 %s172, %s173
      %s175 = smul.addr %s174, 8
      %s176 = scalar_lea.vmem %s2, %s175
      %p177 = pneg %p91
      %p178 = pneg %p88
      %p179 = pneg %p119
      %p180 = pneg %p116
      %s181 = smul.u32 2, %s19
      %p182 = scmp.lt.s32.totalorder %s18, 1
      %s183 = scalar_select %p182, %s18, 1
      %p184 = scmp.lt.s32.totalorder %s181, 1
      %s185 = scalar_select %p184, %s181, 1
      %s186 = smul.addr %s183, 2
      %s187 = sadd.s32 %s185, %s186
      %s188 = smul.addr %s187, 8
      %s189 = scalar_lea.vmem %s3, %s188
      %s190 = smul.u32 2, %s19
      %p191 = scmp.lt.s32.totalorder %s18, 1
      %s192 = scalar_select %p191, %s18, 1
      %p193 = scmp.lt.s32.totalorder %s190, 1
      %s194 = scalar_select %p193, %s190, 1
      %s195 = smul.addr %s192, 2
      %s196 = sadd.s32 %s194, %s195
      %s197 = smul.addr %s196, 8
      %s198 = scalar_lea.vmem %s2, %s197
      %s199 = smul.u32 2, %s19
      %s200 = smul.u32 2, %s19
      %p201 = scmp.lt.s32.totalorder %s18, 1
      %s202 = scalar_select %p201, %s18, 1
      %p203 = scmp.lt.s32.totalorder %s200, 1
      %s204 = scalar_select %p203, %s200, 1
      %s205 = smul.addr %s202, 2
      %s206 = sadd.s32 %s204, %s205
      %s207 = smul.addr %s206, 8
      %s208 = scalar_lea.vmem %s3, %s207
      %s209 = smul.u32 2, %s19
      %v210 = vld [vmem:[%s198] sm:$0xff]
      %v211 = vld [vmem:[%s198 + $0x8] sm:$0xff]
      %v212 = vld [vmem:[%s0] sm:$0xff]
      %214 = vset.pattern.permute.xlu0 0
      %215 = vperm.xlu0 %214, %v212
      %v216 = vpop.permute.xlu0 %215
      %v218 = vmul.f32 %v210, %v216
      %v219 = vmul.f32 %v211, %v216
      %v220 = vld [vmem:[%s1] sm:$0xff]
      %222 = vset.pattern.permute.xlu0 0
      %223 = vperm.xlu0 %222, %v220
      %v224 = vpop.permute.xlu0 %223
      %v226 = vadd.f32 %v218, %v224
      %v227 = vadd.f32 %v219, %v224
      %vm228 = vcmp.ge.f32.partialorder %v226, 0.0
      %vm229 = vcmp.ge.f32.partialorder %v227, 0.0
      %v230 = vmul.f32 %v226, 0.01
      %v231 = vmul.f32 %v227, 0.01
      %v232 = vsel %vm228, %v226, %v230
      %v233 = vsel %vm229, %v227, %v231
      %234 = vst [vmem:[%s208] sm:$0xff] %v232
      %235 = vst [vmem:[%s208 + $0x8] sm:$0xff] %v233
      %s236 = smul.u32 2, %s19
      %p237 = scmp.lt.s32.totalorder %s18, 1
      %s238 = scalar_select %p237, %s18, 1
      %p239 = scmp.lt.s32.totalorder %s236, 1
      %s240 = scalar_select %p239, %s236, 1
      %s241 = smul.addr %s238, 2
      %s242 = sadd.s32 %s240, %s241
      %s243 = smul.addr %s242, 8
      %s244 = scalar_lea.vmem %s3, %s243
      // Predicated region
      $region33: #{conv_block_forward.3} parent=31 // pred_check
        %p245 = pneg %p116
      $region34: #{conv_block_forward.3} parent=31 // pred_check_branch
        %247 = sbr.rel (%p245) target = $region36
      $region35: #{conv_block_forward.3} parent=31 // pred_region
        %s248 = smul.u32 2, %s19
      $region36: #{conv_block_forward.3} parent=31 // pred_fallthru
        _
    $region32: #{conv_block_forward.3} parent=5 // pred_fallthru
      _
    %p249 = scmp.le.s32.totalorder 2, %s9
    // Predicated region
    $region37: #{conv_block_forward.3} parent=5 // pred_check
      %p250 = pneg %p249
    $region38: #{conv_block_forward.3} parent=5 // pred_check_branch
      %252 = sbr.rel (%p250) target = $region40
    $region39: #{conv_block_forward.3} parent=5 // pred_region
      %s253 = ssub.s32 %s9, 2
      // Predicated region
      $region41: #{conv_block_forward.3} parent=39 // pred_check
        %p254 = pneg %p122
      $region42: #{conv_block_forward.3} parent=39 // pred_check_branch
        %256 = sbr.rel (%p254) target = $region44
      $region43: #{conv_block_forward.3} parent=39 // pred_region
        %s257 = smul.u32 2, %s21
        %p258 = scmp.lt.s32.totalorder %s20, 1
        %s259 = scalar_select %p258, %s20, 1
        %p260 = scmp.lt.s32.totalorder %s257, 1
        %s261 = scalar_select %p260, %s257, 1
        %s262 = smul.addr %s259, 2
        %s263 = sadd.s32 %s261, %s262
        %s264 = smul.addr %s263, 8
        %s265 = scalar_lea.vmem %s3, %s264
      $region44: #{conv_block_forward.3} parent=39 // pred_fallthru
        _
    $region40: #{conv_block_forward.3} parent=5 // pred_fallthru
      _
  $region6: #{conv_block_forward.3} parent=0 // loop_footer
    %s13 = sadd.s32 1, %s9
  $region7: #{conv_block_forward.3} parent=0 // loop_footer_branch
    %8 = sbr.rel target = $region3
  $region8: #{conv_block_forward.3} parent=0 // loop_exit
    _

// kernel: conv_block_forward.2
$region0: #{conv_block_forward.2}
  #allocation0 [shape = 'u32[]', space=smem, size = 0x4, offset = 0x4, fixed_abs, tag = 'smem constant byte address 0x4 - core index']
  #allocation1 [shape = 'u32[144,128]{1,0:T(1,128)}', space=vmem, size = 0x12000, scoped, tag = 'internal scratch']
  %s0 = inlined_call_operand.vmem [shape: bf16[8,36], index: 0, kind: input, shape index: {}]
  %s1 = inlined_call_operand.vmem [shape: bf16[2,36,256], index: 1, kind: input, shape index: {}]
  %s2 = inlined_call_operand.vmem [shape: f32[2,8,256], index: 2, kind: output, shape index: {0}]
  %s3 = inlined_call_operand.vmem [shape: f32[8,256], index: 3, kind: output, shape index: {1}]
  %s4 = inlined_call_operand.vmem [shape: f32[8,256], index: 4, kind: output, shape index: {2}]
  %5 = xla_tuple %s2, %s3, %s4
  %s6 = sld [smem:[#allocation0]]
  $region57: #{conv_block_forward.2} parent=0
    _
  %s8 = ssub.s32 1, %s6
  %s9 = scalar_select 0, %s8, %s6
  loop: start=0, step=1, limit=4
  $region2: #{conv_block_forward.2} parent=0 // loop_pre_header
    _
  $region3: #{conv_block_forward.2} parent=0 // loop_header
    %s11 = sphi 0, %s15
    %p12 = scmp.ge.s32.totalorder %s11, 4
    %s18 = sphi 0, %s30
    %s19 = sphi 0, %s26
    %s20 = sphi 0, %s18
    %s21 = sphi 0, %s19
    %s22 = sphi 0, %s20
    %s23 = sphi 0, %s21
    %s31 = sphi 0, %s31
    %s33 = sphi 0, %s31
    %s34 = sphi 0, %s33
    %s48 = sphi 0, %s34
    %s56 = sphi 0, %s58
    %s59 = sphi 0, %s56
    %s60 = sphi 0, %s59
    %s76 = sphi 0, %s60
    %s84 = sphi 0, %s86
    %s87 = sphi 0, %s84
    %s88 = sphi 0, %s87
    %s104 = sphi 0, %s88
    %s112 = sphi 0, %s114
    %s115 = sphi 0, %s112
    %s116 = sphi 0, %s115
    %s132 = sphi 0, %s116
    %s140 = sphi 0, %s142
    %s143 = sphi 0, %s140
    %s144 = sphi 0, %s143
    %s160 = sphi 0, %s144
  $region4: #{conv_block_forward.2} parent=0 // loop_header_branch
    %14 = sbr.rel (%p12) target = $region8
  $region5: #{conv_block_forward.2} parent=0 // loop_body
    %s16 = ssub.s32 %s11, 1
    %s17 = ssub.s32 %s11, 2
    %s24 = sadd.s32 1, %s19
    %p25 = scmp.ge.s32.totalorder %s24, 1
    %s26 = scalar_select %p25, 0, %s24
    %s27 = sadd.s32 1, %s18
    %s28 = scalar_select %p25, %s27, %s18
    %p29 = scmp.ge.s32.totalorder %s28, 2
    %s30 = scalar_select %p29, 0, %s28
    %s32 = sadd.s32 %s31, 1
    %p35 = scmp.eq.s32.totalorder %s11, 1
    %p36 = scmp.ne.s32.totalorder %s31, %s33
    %p37 = scmp.eq.s32.totalorder %s11, 0
    %p38 = por %p36, %p37
    %p39 = scmp.ne.s32.totalorder %s31, %s33
    %p40 = scmp.eq.s32.totalorder %s16, 1
    %p41 = por %p39, %p40
    %p42 = scmp.ne.s32.totalorder %s33, %s34
    %p43 = scmp.eq.s32.totalorder %s16, 0
    %p44 = por %p42, %p43
    %p45 = scmp.ne.s32.totalorder %s33, %s34
    %p46 = scmp.eq.s32.totalorder %s17, 1
    %p47 = por %p45, %p46
    %p49 = scmp.ne.s32.totalorder %s34, %s48
    %p50 = scmp.eq.s32.totalorder %s17, 0
    %p51 = por %p49, %p50
    %s52 = ssub.s32 %s18, %s30
    %s53 = ssub.s32 %s19, %s26
    %s54 = sor.u32 %s52, %s53
    %p55 = scmp.eq.s32.totalorder %s54, 0
    %s57 = sadd.s32 %s56, 1
    %s58 = scalar_select %p55, %s56, %s57
    %p61 = pneg %p55
    %p62 = scmp.eq.s32.totalorder %s11, 1
    %p63 = por %p61, %p62
    %p64 = scmp.ne.s32.totalorder %s56, %s59
    %p65 = scmp.eq.s32.totalorder %s11, 0
    %p66 = por %p64, %p65
    %p67 = scmp.ne.s32.totalorder %s56, %s59
    %p68 = scmp.eq.s32.totalorder %s16, 1
    %p69 = por %p67, %p68
    %p70 = scmp.ne.s32.totalorder %s59, %s60
    %p71 = scmp.eq.s32.totalorder %s16, 0
    %p72 = por %p70, %p71
    %p73 = scmp.ne.s32.totalorder %s59, %s60
    %p74 = scmp.eq.s32.totalorder %s17, 1
    %p75 = por %p73, %p74
    %p77 = scmp.ne.s32.totalorder %s60, %s76
    %p78 = scmp.eq.s32.totalorder %s17, 0
    %p79 = por %p77, %p78
    %s80 = ssub.s32 %s18, %s30
    %s81 = ssub.s32 %s19, %s26
    %s82 = sor.u32 %s80, %s81
    %p83 = scmp.eq.s32.totalorder %s82, 0
    %s85 = sadd.s32 %s84, 1
    %s86 = scalar_select %p83, %s84, %s85
    %p89 = pneg %p83
    %p90 = scmp.eq.s32.totalorder %s11, 1
    %p91 = por %p89, %p90
    %p92 = scmp.ne.s32.totalorder %s84, %s87
    %p93 = scmp.eq.s32.totalorder %s11, 0
    %p94 = por %p92, %p93
    %p95 = scmp.ne.s32.totalorder %s84, %s87
    %p96 = scmp.eq.s32.totalorder %s16, 1
    %p97 = por %p95, %p96
    %p98 = scmp.ne.s32.totalorder %s87, %s88
    %p99 = scmp.eq.s32.totalorder %s16, 0
    %p100 = por %p98, %p99
    %p101 = scmp.ne.s32.totalorder %s87, %s88
    %p102 = scmp.eq.s32.totalorder %s17, 1
    %p103 = por %p101, %p102
    %p105 = scmp.ne.s32.totalorder %s88, %s104
    %p106 = scmp.eq.s32.totalorder %s17, 0
    %p107 = por %p105, %p106
    %s108 = sadd.s32 %s18, %s19
    %s109 = sadd.s32 %s30, %s26
    %s110 = ssub.s32 %s108, %s109
    %p111 = scmp.eq.s32.totalorder %s110, 0
    %s113 = sadd.s32 %s112, 1
    %s114 = scalar_select %p111, %s112, %s113
    %p117 = pneg %p111
    %p118 = scmp.eq.s32.totalorder %s11, 1
    %p119 = por %p117, %p118
    %p120 = scmp.ne.s32.totalorder %s112, %s115
    %p121 = scmp.eq.s32.totalorder %s11, 0
    %p122 = por %p120, %p121
    %p123 = scmp.ne.s32.totalorder %s112, %s115
    %p124 = scmp.eq.s32.totalorder %s16, 1
    %p125 = por %p123, %p124
    %p126 = scmp.ne.s32.totalorder %s115, %s116
    %p127 = scmp.eq.s32.totalorder %s16, 0
    %p128 = por %p126, %p127
    %p129 = scmp.ne.s32.totalorder %s115, %s116
    %p130 = scmp.eq.s32.totalorder %s17, 1
    %p131 = por %p129, %p130
    %p133 = scmp.ne.s32.totalorder %s116, %s132
    %p134 = scmp.eq.s32.totalorder %s17, 0
    %p135 = por %p133, %p134
    %s136 = sadd.s32 %s18, %s19
    %s137 = sadd.s32 %s30, %s26
    %s138 = ssub.s32 %s136, %s137
    %p139 = scmp.eq.s32.totalorder %s138, 0
    %s141 = sadd.s32 %s140, 1
    %s142 = scalar_select %p139, %s140, %s141
    %p145 = pneg %p139
    %p146 = scmp.eq.s32.totalorder %s11, 1
    %p147 = por %p145, %p146
    %p148 = scmp.ne.s32.totalorder %s140, %s143
    %p149 = scmp.eq.s32.totalorder %s11, 0
    %p150 = por %p148, %p149
    %p151 = scmp.ne.s32.totalorder %s140, %s143
    %p152 = scmp.eq.s32.totalorder %s16, 1
    %p153 = por %p151, %p152
    %p154 = scmp.ne.s32.totalorder %s143, %s144
    %p155 = scmp.eq.s32.totalorder %s16, 0
    %p156 = por %p154, %p155
    %p157 = scmp.ne.s32.totalorder %s143, %s144
    %p158 = scmp.eq.s32.totalorder %s17, 1
    %p159 = por %p157, %p158
    %p161 = scmp.ne.s32.totalorder %s144, %s160
    %p162 = scmp.eq.s32.totalorder %s17, 0
    %p163 = por %p161, %p162
    %p164 = scmp.le.s32.totalorder 1, %s11
    %p165 = scmp.lt.s32.totalorder %s11, 3
    %p166 = pnand %p164, %p165
    %p167 = pneg %p166
    // Predicated region
    $region9: #{conv_block_forward.2} parent=5 // pred_check
      _
    $region10: #{conv_block_forward.2} parent=5 // pred_check_branch
      %169 = sbr.rel (%p166) target = $region12
    $region11: #{conv_block_forward.2} parent=5 // pred_region
      %s170 = ssub.s32 %s11, 1
      // Predicated region
      $region13: #{conv_block_forward.2} parent=11 // pred_check
        %p171 = pneg %p44
      $region14: #{conv_block_forward.2} parent=11 // pred_check_branch
        %173 = sbr.rel (%p171) target = $region16
      $region15: #{conv_block_forward.2} parent=11 // pred_region
        _
      $region16: #{conv_block_forward.2} parent=11 // pred_fallthru
        _
    $region12: #{conv_block_forward.2} parent=5 // pred_fallthru
      _
    %p174 = scmp.lt.s32.totalorder %s11, 2
    // Predicated region
    $region17: #{conv_block_forward.2} parent=5 // pred_check
      %p175 = pneg %p174
    $region18: #{conv_block_forward.2} parent=5 // pred_check_branch
      %177 = sbr.rel (%p175) target = $region20
    $region19: #{conv_block_forward.2} parent=5 // pred_region
      // Predicated region
      $region21: #{conv_block_forward.2} parent=19 // pred_check
        %p178 = pneg %p66
      $region22: #{conv_block_forward.2} parent=19 // pred_check_branch
        %180 = sbr.rel (%p178) target = $region24
      $region23: #{conv_block_forward.2} parent=19 // pred_region
        %s181 = smul.u32 2, %s19
        %p182 = scmp.lt.s32.totalorder %s18, 1
        %s183 = scalar_select %p182, %s18, 1
        %p184 = scmp.lt.s32.totalorder %s181, 1
        %s185 = scalar_select %p184, %s181, 1
        %s186 = smul.addr %s183, 10
        %s187 = sadd.s32 %s185, %s186
        %s188 = smul.addr %s187, 4
        %s189 = scalar_lea.vmem %s1, %s188
        %s190 = smul.u32 2, %s19
      $region24: #{conv_block_forward.2} parent=19 // pred_fallthru
        _
    $region20: #{conv_block_forward.2} parent=5 // pred_fallthru
      _
    %p191 = scmp.le.s32.totalorder 1, %s11
    %p192 = scmp.lt.s32.totalorder %s11, 3
    %p193 = pnand %p191, %p192
    %p194 = pneg %p193
    // Predicated region
    $region25: #{conv_block_forward.2} parent=5 // pred_check
      _
    $region26: #{conv_block_forward.2} parent=5 // pred_check_branch
      %196 = sbr.rel (%p193) target = $region28
    $region27: #{conv_block_forward.2} parent=5 // pred_region
      %s197 = ssub.s32 %s11, 1
      %p198 = pneg %p44
      %p199 = pneg %p41
      %s200 = smul.u32 2, %s21
      %p201 = scmp.lt.s32.totalorder %s20, 1
      %s202 = scalar_select %p201, %s20, 1
      %p203 = scmp.lt.s32.totalorder %s200, 1
      %s204 = scalar_select %p203, %s200, 1
      %s205 = smul.addr %s202, 10
      %s206 = sadd.s32 %s204, %s205
      %s207 = smul.addr %s206, 4
      %s208 = scalar_lea.vmem %s1, %s207
      %p209 = pneg %p72
      %p210 = pneg %p69
      %p211 = pneg %p100
      %p212 = pneg %p97
      %s213 = smul.u32 2, %s21
      %p214 = scmp.lt.s32.totalorder %s20, 1
      %s215 = scalar_select %p214, %s20, 1
      %p216 = scmp.lt.s32.totalorder %s213, 1
      %s217 = scalar_select %p216, %s213, 1
      %s218 = smul.addr %s215, 2
      %s219 = sadd.s32 %s217, %s218
      %s220 = smul.addr %s219, 8
      %s221 = scalar_lea.vmem %s2, %s220
      %p222 = pneg %p128
      %p223 = pneg %p125
      %s224 = sadd.s32 %s20, %s21
      %p225 = scmp.lt.s32.totalorder %s224, 1
      %s226 = scalar_select %p225, %s224, 1
      %s227 = smul.addr %s226, 8
      %s228 = scalar_lea.vmem %s3, %s227
      %p229 = pneg %p156
      %p230 = pneg %p153
      %s231 = sadd.s32 %s20, %s21
      %p232 = scmp.lt.s32.totalorder %s231, 1
      %s233 = scalar_select %p232, %s231, 1
      %s234 = smul.addr %s233, 8
      %s235 = scalar_lea.vmem %s4, %s234
      %s236 = smul.u32 2, %s21
      %p237 = scmp.lt.s32.totalorder %s20, 1
      %s238 = scalar_select %p237, %s20, 1
      %p239 = scmp.lt.s32.totalorder %s236, 1
      %s240 = scalar_select %p239, %s236, 1
      %s241 = smul.addr %s238, 10
      %s242 = sadd.s32 %s240, %s241
      %s243 = smul.addr %s242, 4
      %s244 = scalar_lea.vmem %s1, %s243
      %s245 = smul.u32 2, %s21
      %s246 = smul.u32 2, %s21
      %p247 = scmp.lt.s32.totalorder %s20, 1
      %s248 = scalar_select %p247, %s20, 1
      %p249 = scmp.lt.s32.totalorder %s246, 1
      %s250 = scalar_select %p249, %s246, 1
      %s251 = smul.addr %s248, 2
      %s252 = sadd.s32 %s250, %s251
      %s253 = smul.addr %s252, 8
      %s254 = scalar_lea.vmem %s2, %s253
      %s255 = smul.u32 2, %s21
      %s256 = sadd.s32 %s20, %s21
      %p257 = scmp.lt.s32.totalorder %s256, 1
      %s258 = scalar_select %p257, %s256, 1
      %s259 = smul.addr %s258, 8
      %s260 = scalar_lea.vmem %s3, %s259
      %s261 = sadd.s32 %s20, %s21
      %s262 = sadd.s32 %s20, %s21
      %p263 = scmp.lt.s32.totalorder %s262, 1
      %s264 = scalar_select %p263, %s262, 1
      %s265 = smul.addr %s264, 8
      %s266 = scalar_lea.vmem %s4, %s265
      %s267 = sadd.s32 %s20, %s21
      %v269 = vld [vmem:[%s0] sm:$0xf]
      %v270 = vld [vmem:[%s244] sm:$0xff]
      %v271 = vld [vmem:[%s244 + $0x8] sm:$0xff]
      %v272 = vld [vmem:[%s244 + $0x10] sm:$0xff]
      %v273 = vld [vmem:[%s244 + $0x18] sm:$0xff]
      %v274 = vld [vmem:[%s244 + $0x20] sm:$0x33]
      %v280 = vunpack.c.l.b16 %v270
      %v281 = vunpack.c.h.b16 %v270
      %v282 = vunpack.c.l.b16 %v271
      %v283 = vunpack.c.h.b16 %v271
      %v284 = vunpack.c.l.b16 %v272
      %v285 = vunpack.c.h.b16 %v272
      %v286 = vunpack.c.l.b16 %v273
      %v287 = vunpack.c.h.b16 %v273
      %v288 = vunpack.c.l.b16 %v274
      %v289 = vunpack.c.h.b16 %v274
      %v290 = vpack.c.b16 %v282, %v280
      %v291 = vpack.c.b16 %v283, %v281
      %v292 = vpack.c.b16 %v286, %v284
      %v293 = vpack.c.b16 %v287, %v285
      %v294 = vpack.c.b16 %v288, %v288
      %v295 = vpack.c.b16 %v289, %v289
      %vm300 = vcmask 293888
      %v302 = vsel %vm300, %v269, 0
      %vm304 = vcmask 1041408
      %v306 = vsel %vm304, %v294, 0
      %v309 = vsel %vm304, %v295, 0
      %311 = vmatprep.subr.bf16.mxu0 %v291
      %312 = vmatpush1.bf16.msra.mxu0 %v290
      %313 = vmatprep.subr.bf16.mxu0 %v293
      %314 = vmatpush1.bf16.msra.mxu0 %v292
      %315 = vmatprep.subr.bf16.mxu0 %v309
      %316 = vmatpush1.bf16.msra.mxu0 %v306
      %317 = vmatprep.subr.bf16.mxu0 0
      %318 = vmatpush1.bf16.msra.mxu0 0
      %319 = vmatprep.subr.bf16.mxu0 0
      %320 = vmatpush1.bf16.msra.mxu0 0
      %321 = vmatprep.subr.bf16.mxu0 0
      %322 = vmatpush1.bf16.msra.mxu0 0
      %323 = vmatprep.subr.bf16.mxu0 0
      %324 = vmatpush1.bf16.msra.mxu0 0
      %325 = vmatprep.subr.bf16.mxu0 0
      %326 = vmatpush1.bf16.msra.mxu0 0
      %327 = vmatprep.subr.bf16.mxu0 0
      %328 = vmatpush1.bf16.msra.mxu0 0
      %329 = vmatprep.subr.bf16.mxu0 0
      %330 = vmatpush1.bf16.msra.mxu0 0
      %331 = vmatprep.subr.bf16.mxu0 0
      %332 = vmatpush1.bf16.msra.mxu0 0
      %333 = vmatprep.subr.bf16.mxu0 0
      %334 = vmatpush1.bf16.msra.mxu0 0
      %335 = vmatprep.subr.bf16.mxu0 0
      %336 = vmatpush1.bf16.msra.mxu0 0
      %337 = vmatprep.subr.bf16.mxu0 0
      %338 = vmatpush1.bf16.msra.mxu0 0
      %339 = vmatprep.subr.bf16.mxu0 0
      %340 = vmatpush1.bf16.msra.mxu0 0
      %341 = vmatprep.subr.bf16.mxu0 0
      %342 = vmatpush1.bf16.msra.mxu0 0
      %343 = vmatprep.mubr.bf16.mxu0 0
      %344 = vmatmul.mubr.bf16.gmra.mrb[0].mxu0 %v302
      %v345 = vpop.f32.mrb[0].mxu0
      %v346 = vadd.f32 0.0, %v345
      %v347 = vpop.f32.mrb[0].mxu0
      %v348 = vadd.f32 0.0, %v347
      %v349 = vpop.f32.mrb[0].mxu0
      %v350 = vpop.f32.mrb[0].mxu0
      %351 = vdwg.mxu0
      %352 = vst [vmem:[%s254] sm:$0xff] %v346
      %353 = vst [vmem:[%s254 + $0x8] sm:$0xff] %v348
      %v354 = vadd.f32 %v346, %v348
      %355 = vadd.xlane.f32.xlu0 %v354
      %v356 = vpop.xlane.xlu0 %355
      %v357 = vmul.f32 %v346, %v346
      %v358 = vmul.f32 %v348, %v348
      %v359 = vadd.f32 %v357, %v358
      %360 = vadd.xlane.f32.xlu0 %v359
      %v361 = vpop.xlane.xlu0 %360
      %362 = vst [vmem:[%s260] sm:$0xff] %v356
      %363 = vst [vmem:[%s266] sm:$0xff] %v361
      %s364 = smul.u32 2, %s21
      %p365 = scmp.lt.s32.totalorder %s20, 1
      %s366 = scalar_select %p365, %s20, 1
      %p367 = scmp.lt.s32.totalorder %s364, 1
      %s368 = scalar_select %p367, %s364, 1
      %s369 = smul.addr %s366, 2
      %s370 = sadd.s32 %s368, %s369
      %s371 = smul.addr %s370, 8
      %s372 = scalar_lea.vmem %s2, %s371
      %s373 = sadd.s32 %s20, %s21
      %p374 = scmp.lt.s32.totalorder %s373, 1
      %s375 = scalar_select %p374, %s373, 1
      %s376 = smul.addr %s375, 8
      %s377 = scalar_lea.vmem %s3, %s376
      %s378 = sadd.s32 %s20, %s21
      %p379 = scmp.lt.s32.totalorder %s378, 1
      %s380 = scalar_select %p379, %s378, 1
      %s381 = smul.addr %s380, 8
      %s382 = scalar_lea.vmem %s4, %s381
      // Predicated region
      $region29: #{conv_block_forward.2} parent=27 // pred_check
        %p383 = pneg %p97
      $region30: #{conv_block_forward.2} parent=27 // pred_check_branch
        %385 = sbr.rel (%p383) target = $region32
      $region31: #{conv_block_forward.2} parent=27 // pred_region
        %s386 = smul.u32 2, %s21
      $region32: #{conv_block_forward.2} parent=27 // pred_fallthru
        _
      // Predicated region
      $region33: #{conv_block_forward.2} parent=27 // pred_check
        %p387 = pneg %p125
      $region34: #{conv_block_forward.2} parent=27 // pred_check_branch
        %389 = sbr.rel (%p387) target = $region36
      $region35: #{conv_block_forward.2} parent=27 // pred_region
        %s390 = sadd.s32 %s20, %s21
      $region36: #{conv_block_forward.2} parent=27 // pred_fallthru
        _
      // Predicated region
      $region37: #{conv_block_forward.2} parent=27 // pred_check
        %p391 = pneg %p153
      $region38: #{conv_block_forward.2} parent=27 // pred_check_branch
        %393 = sbr.rel (%p391) target = $region40
      $region39: #{conv_block_forward.2} parent=27 // pred_region
        %s394 = sadd.s32 %s20, %s21
      $region40: #{conv_block_forward.2} parent=27 // pred_fallthru
        _
    $region28: #{conv_block_forward.2} parent=5 // pred_fallthru
      _
    %p395 = scmp.le.s32.totalorder 2, %s11
    // Predicated region
    $region41: #{conv_block_forward.2} parent=5 // pred_check
      %p396 = pneg %p395
    $region42: #{conv_block_forward.2} parent=5 // pred_check_branch
      %398 = sbr.rel (%p396) target = $region44
    $region43: #{conv_block_forward.2} parent=5 // pred_region
      %s399 = ssub.s32 %s11, 2
      // Predicated region
      $region45: #{conv_block_forward.2} parent=43 // pred_check
        %p400 = pneg %p103
      $region46: #{conv_block_forward.2} parent=43 // pred_check_branch
        %402 = sbr.rel (%p400) target = $region48
      $region47: #{conv_block_forward.2} parent=43 // pred_region
        %s403 = smul.u32 2, %s23
        %p404 = scmp.lt.s32.totalorder %s22, 1
        %s405 = scalar_select %p404, %s22, 1
        %p406 = scmp.lt.s32.totalorder %s403, 1
        %s407 = scalar_select %p406, %s403, 1
        %s408 = smul.addr %s405, 2
        %s409 = sadd.s32 %s407, %s408
        %s410 = smul.addr %s409, 8
        %s411 = scalar_lea.vmem %s2, %s410
      $region48: #{conv_block_forward.2} parent=43 // pred_fallthru
        _
      // Predicated region
      $region49: #{conv_block_forward.2} parent=43 // pred_check
        %p412 = pneg %p131
      $region50: #{conv_block_forward.2} parent=43 // pred_check_branch
        %414 = sbr.rel (%p412) target = $region52
      $region51: #{conv_block_forward.2} parent=43 // pred_region
        %s415 = sadd.s32 %s22, %s23
        %p416 = scmp.lt.s32.totalorder %s415, 1
        %s417 = scalar_select %p416, %s415, 1
        %s418 = smul.addr %s417, 8
        %s419 = scalar_lea.vmem %s3, %s418
      $region52: #{conv_block_forward.2} parent=43 // pred_fallthru
        _
      // Predicated region
      $region53: #{conv_block_forward.2} parent=43 // pred_check
        %p420 = pneg %p159
      $region54: #{conv_block_forward.2} parent=43 // pred_check_branch
        %422 = sbr.rel (%p420) target = $region56
      $region55: #{conv_block_forward.2} parent=43 // pred_region
        %s423 = sadd.s32 %s22, %s23
        %p424 = scmp.lt.s32.totalorder %s423, 1
        %s425 = scalar_select %p424, %s423, 1
        %s426 = smul.addr %s425, 8
        %s427 = scalar_lea.vmem %s4, %s426
      $region56: #{conv_block_forward.2} parent=43 // pred_fallthru
        _
    $region44: #{conv_block_forward.2} parent=5 // pred_fallthru
      _
  $region6: #{conv_block_forward.2} parent=0 // loop_footer
    %s15 = sadd.s32 1, %s11
  $region7: #{conv_block_forward.2} parent=0 // loop_footer_branch
    %10 = sbr.rel target = $region3
  $region8: #{conv_block_forward.2} parent=0 // loop_exit
    _

</llo_original>
